<compile_context>
chip_gen: v6e
topology: v6e:2x2x1
jax: 0.10.0
libtpu: 0.0.40
codegen_flags: <defaults>
</compile_context>

<pallas_src>
import functools
import math

import jax
import jax.numpy as jnp
import numpy as np
from jax.experimental import pallas as pl
from jax.experimental.pallas import tpu as pltpu


def _resnet_adain_kernel(x_ref, w1_ref, w2_ref, scale_ref, gamma_ref, y_ref,
                         xpad_ref, hpad_ref, *, eps):
    f32 = jnp.float32
    bf16 = jnp.bfloat16
    C, L = x_ref.shape
    C4 = w1_ref.shape[1]
    b = pl.program_id(0)

    x = x_ref[...]                       # (C, L) f32 slab for this batch
    gamma = gamma_ref[0]                 # SMEM scalar
    scale = scale_ref[b]                 # per-batch ECA sigmoid scale (SMEM)

    def full_sum(t):
        # (rows, L) -> (1, 1): lane reduce then sublane reduce
        return jnp.sum(jnp.sum(t, axis=1, keepdims=True), axis=0, keepdims=True)

    def stats(t, n):
        # one-pass mean / unbiased variance (torch.var default, ddof=1)
        s = full_sum(t)
        ss = full_sum(t * t)
        mean = s / n
        var = (ss - s * mean) / (n - 1.0)
        return mean, var

    def conv3(src_pad_ref, w_ref, out_rows):
        # Conv1d(k=3, pad=1, no bias): three +-1-lane static sliced loads from
        # the zero-padded VMEM scratch, accumulated through the MXU in f32.
        acc = jnp.zeros((out_rows, L), f32)
        for k in range(3):                               # unrolled, static
            tap = src_pad_ref[:, k:k + L]                # (rows, L) bf16
            acc = acc + jnp.dot(w_ref[k], tap, preferred_element_type=f32)
        return acc

    # ---- conv1: Conv1d(C -> 4C, k=3, pad=1)
    xpad_ref[...] = jnp.zeros((C, L + 2), bf16)
    xpad_ref[:, 1:L + 1] = x.astype(bf16)
    out1 = conv3(xpad_ref, w1_ref, C4)                   # (4C, L) f32

    # ---- ECA scale (precomputed per batch in the wrapper) folded into adaIN1:
    #   adaIN(scale*t) == (t - mean(t)) * scale*gamma*rsqrt(scale^2*var(t)+eps)
    n1 = float(C4 * L)
    m1, v1 = stats(out1, n1)
    coef1 = (scale * gamma) * jax.lax.rsqrt(scale * scale * v1 + eps)
    h = jnp.maximum((out1 - m1) * coef1, 0.0)            # ReLU, (4C, L) f32

    # ---- conv2: Conv1d(4C -> C, k=3, pad=1)
    hpad_ref[...] = jnp.zeros((C4, L + 2), bf16)
    hpad_ref[:, 1:L + 1] = h.astype(bf16)
    out2 = conv3(hpad_ref, w2_ref, C)                    # (C, L) f32

    # ---- adaIN 2 + residual (single lane-dense store of the result)
    n2 = float(C * L)
    m2, v2 = stats(out2, n2)
    y_ref[...] = x + (out2 - m2) * (gamma * jax.lax.rsqrt(v2 + eps))


def resnet_adain_block(x, w1, w2, w_eca, gamma, eps=1e-5):
    """x: (B, C, L) NCL (PyTorch Conv1d convention). Returns (B, C, L)."""
    B, C, L = x.shape
    C4 = w1.shape[0]
    k_eca = w_eca.shape[-1]
    pad = (k_eca - 1) // 2

    x = jnp.asarray(x, jnp.float32)
    w1_f32 = jnp.asarray(w1, jnp.float32)
    w2_f32 = jnp.asarray(w2, jnp.float32)

    # ---- ECA scale ("pass 1"), computed exactly in XLA via linearity:
    # mean_{4C,L} conv1(x)[b] only needs channel-summed conv weights and
    # per-(batch, channel) sums of x (with edge corrections for the padding).
    wsum = jnp.sum(w1_f32, axis=0)                       # (C, 3)
    s_all = jnp.sum(x, axis=2)                           # (B, C)
    s_m1 = s_all - x[:, :, -1]                           # sum_l x[b,c,l-1]
    s_p1 = s_all - x[:, :, 0]                            # sum_l x[b,c,l+1]
    pooled = (s_m1 @ wsum[:, 0] + s_all @ wsum[:, 1]
              + s_p1 @ wsum[:, 2]) / (C4 * L)            # (B,)
    we = jnp.asarray(w_eca, jnp.float32).reshape(1, 1, k_eca)
    conv = jax.lax.conv_general_dilated(                 # 1-D conv ACROSS batch
        pooled[None, None, :], we, window_strides=(1,), padding=((pad, pad),),
        dimension_numbers=('NCH', 'OIH', 'NCH'))[0, 0]
    eca_scale = jax.nn.sigmoid(conv).astype(jnp.float32)  # (B,)

    # MXU operands in bf16 (f32 accumulation in-kernel); tap-major weights.
    w1t = jnp.transpose(w1_f32, (2, 0, 1)).astype(jnp.bfloat16)   # (3, 4C, C)
    w2t = jnp.transpose(w2_f32, (2, 0, 1)).astype(jnp.bfloat16)   # (3, C, 4C)
    gamma_arr = jnp.asarray([gamma], jnp.float32)

    smem = pl.BlockSpec(memory_space=pltpu.MemorySpace.SMEM)

    return pl.pallas_call(
        functools.partial(_resnet_adain_kernel, eps=float(eps)),
        out_shape=jax.ShapeDtypeStruct((B, C, L), jnp.float32),
        grid=(B,),
        in_specs=[
            pl.BlockSpec((None, C, L), lambda b: (b, 0, 0)),   # x: one batch slab
            pl.BlockSpec((3, C4, C), lambda b: (0, 0, 0)),     # w1 (resident)
            pl.BlockSpec((3, C, C4), lambda b: (0, 0, 0)),     # w2 (resident)
            smem,                                              # eca_scale (B,)
            smem,                                              # gamma (1,)
        ],
        out_specs=pl.BlockSpec((None, C, L), lambda b: (b, 0, 0)),
        scratch_shapes=[
            pltpu.VMEM((C, L + 2), jnp.bfloat16),              # padded conv1 input
            pltpu.VMEM((C4, L + 2), jnp.bfloat16),             # padded conv2 input
        ],
        compiler_params=pltpu.CompilerParams(
            dimension_semantics=("parallel",),                 # megacore over batch
            vmem_limit_bytes=32 * 1024 * 1024),                # safe on v5e/v6e/v7x
    )(x, w1t, w2t, eca_scale, gamma_arr)


def reference(x, w1, w2, w_eca, gamma, eps=1e-5):
    """Plain-JAX f32 reference that mirrors the PyTorch forward exactly."""
    def conv1d(inp, w):
        return jax.lax.conv_general_dilated(
            inp, w, window_strides=(1,), padding=((1, 1),),
            dimension_numbers=('NCH', 'OIH', 'NCH'))

    def adain(t):
        m = jnp.mean(t, axis=(1, 2), keepdims=True)
        v = jnp.var(t, axis=(1, 2), keepdims=True, ddof=1)   # torch.var unbiased
        return (t - m) / jnp.sqrt(v + eps) * gamma

    B = x.shape[0]
    out = conv1d(x, w1)
    # ECANet on a 3-D tensor: pool over dims (1,2), conv across batch, sigmoid
    pooled = jnp.mean(out, axis=(1, 2))
    we = w_eca.reshape(-1)
    k = we.shape[0]
    pad = (k - 1) // 2
    pp = jnp.pad(pooled, (pad, pad))
    conv = jnp.stack([jnp.sum(pp[a:a + k] * we) for a in range(B)])
    out = out * jax.nn.sigmoid(conv)[:, None, None]
    out = jnp.maximum(adain(out), 0.0)
    out = conv1d(out, w2)
    out = adain(out)
    return x + out


if __name__ == "__main__":
    B, enc_in, L = 2, 4, 16
    C4 = enc_in * 4

    # ECA kernel size, same formula as the PyTorch module (gamma=2, b=1)
    ks = int(abs((math.log(C4, 2) + 1) / 2))
    ks = ks if ks % 2 else ks + 1

    key = jax.random.PRNGKey(0)
    k1, k2, k3, k4 = jax.random.split(key, 4)

    x = jax.random.normal(k1, (B, enc_in, L), jnp.float32)
    b1 = 1.0 / math.sqrt(enc_in * 3)
    w1 = jax.random.uniform(k2, (C4, enc_in, 3), jnp.float32, -b1, b1)
    b2 = 1.0 / math.sqrt(C4 * 3)
    w2 = jax.random.uniform(k3, (enc_in, C4, 3), jnp.float32, -b2, b2)
    beca = 1.0 / math.sqrt(ks)
    w_eca = jax.random.uniform(k4, (1, 1, ks), jnp.float32, -beca, beca)
    gamma = 0.5

    y = resnet_adain_block(x, w1, w2, w_eca, gamma)
    y = jax.block_until_ready(y)

    # bf16 MXU operands vs. f32 reference -> relaxed tolerance.
    y_ref = reference(x, w1, w2, w_eca, gamma)
    np.testing.assert_allclose(np.asarray(y), np.asarray(y_ref),
                               rtol=2e-2, atol=2e-2)
    print("KERNEL_OK")
</pallas_src>

<mosaic_0001>
module attributes {stable_mosaic.version = 11 : i64} {
  func.func @_resnet_adain_kernel(%arg0: i32, %arg1: memref<1x4x16xf32, #tpu.memory_space<vmem>>, %arg2: memref<3x16x4xbf16, #tpu.memory_space<vmem>>, %arg3: memref<3x4x16xbf16, #tpu.memory_space<vmem>>, %arg4: memref<2xf32, #tpu.memory_space<smem>>, %arg5: memref<1xf32, #tpu.memory_space<smem>>, %arg6: memref<1x4x16xf32, #tpu.memory_space<vmem>>, %arg7: memref<4x18xbf16, #tpu.memory_space<vmem>>, %arg8: memref<16x18xbf16, #tpu.memory_space<vmem>>) attributes {dimension_semantics = [#tpu.dimension_semantics<parallel>], iteration_bounds = array<i64: 2>, scalar_prefetch = 0 : i64, scratch_operands = 2 : i64, tpu.core_type = #tpu.core_type<tc>, window_params = [{transform_indices = @transform_0, window_bounds = array<i64: 1, 4, 16>}, {pipeline_mode = #tpu.pipeline_mode<synchronous>, transform_indices = @transform_1, window_bounds = array<i64: 3, 16, 4>}, {pipeline_mode = #tpu.pipeline_mode<synchronous>, transform_indices = @transform_2, window_bounds = array<i64: 3, 4, 16>}, {transform_indices = @transform_3, window_bounds = array<i64: 2>}, {transform_indices = @transform_4, window_bounds = array<i64: 1>}, {transform_indices = @transform_5, window_bounds = array<i64: 1, 4, 16>}]} {
    %c0 = arith.constant 0 : index
    %c0_0 = arith.constant 0 : index
    %c0_1 = arith.constant 0 : index
    %0 = vector.load %arg1[%c0, %c0_0, %c0_1] : memref<1x4x16xf32, #tpu.memory_space<vmem>>, vector<1x4x16xf32>
    %1 = vector.shape_cast %0 : vector<1x4x16xf32> to vector<4x16xf32>
    %c0_2 = arith.constant 0 : index
    %2 = memref.load %arg5[%c0_2] : memref<1xf32, #tpu.memory_space<smem>>
    %3 = arith.index_cast %arg0 : i32 to index
    %4 = memref.load %arg4[%3] : memref<2xf32, #tpu.memory_space<smem>>
    %cst = arith.constant 0.000000e+00 : bf16
    %5 = vector.broadcast %cst : bf16 to vector<4x18xbf16>
    %c0_3 = arith.constant 0 : index
    %c0_4 = arith.constant 0 : index
    %6 = vector.load %arg7[%c0_3, %c0_4] : memref<4x18xbf16, #tpu.memory_space<vmem>>, vector<4x18xbf16>
    tpu.vector_store %arg7[%c0_3, %c0_4], %5 {strides = array<i32>} : memref<4x18xbf16, #tpu.memory_space<vmem>>, vector<4x18xbf16>,
    %7 = arith.truncf %1 : vector<4x16xf32> to vector<4x16xbf16>
    %c0_5 = arith.constant 0 : index
    %c1 = arith.constant 1 : index
    %8 = vector.load %arg7[%c0_5, %c1] : memref<4x18xbf16, #tpu.memory_space<vmem>>, vector<4x16xbf16>
    tpu.vector_store %arg7[%c0_5, %c1], %7 {strides = array<i32>} : memref<4x18xbf16, #tpu.memory_space<vmem>>, vector<4x16xbf16>,
    %cst_6 = arith.constant 0.000000e+00 : f32
    %9 = vector.broadcast %cst_6 : f32 to vector<16x16xf32>
    %c0_7 = arith.constant 0 : index
    %c0_8 = arith.constant 0 : index
    %10 = vector.load %arg7[%c0_7, %c0_8] : memref<4x18xbf16, #tpu.memory_space<vmem>>, vector<4x16xbf16>
    %c0_9 = arith.constant 0 : index
    %c0_10 = arith.constant 0 : index
    %c0_11 = arith.constant 0 : index
    %11 = vector.load %arg2[%c0_9, %c0_10, %c0_11] : memref<3x16x4xbf16, #tpu.memory_space<vmem>>, vector<1x16x4xbf16>
    %12 = vector.shape_cast %11 : vector<1x16x4xbf16> to vector<16x4xbf16>
    %cst_12 = arith.constant dense<0.000000e+00> : vector<16x16xf32>
    %13 = tpu.matmul %12, %10, %cst_12 {dimension_numbers = #tpu.dot_dimension_numbers<[1], [0], [0], [1], [0, 0, 1, 1], [], []>} : vector<16x4xbf16>, vector<4x16xbf16>, vector<16x16xf32> -> vector<16x16xf32>
    %14 = arith.addf %9, %13 : vector<16x16xf32>
    %c0_13 = arith.constant 0 : index
    %c1_14 = arith.constant 1 : index
    %15 = vector.load %arg7[%c0_13, %c1_14] : memref<4x18xbf16, #tpu.memory_space<vmem>>, vector<4x16xbf16>
    %c1_15 = arith.constant 1 : index
    %c0_16 = arith.constant 0 : index
    %c0_17 = arith.constant 0 : index
    %16 = vector.load %arg2[%c1_15, %c0_16, %c0_17] : memref<3x16x4xbf16, #tpu.memory_space<vmem>>, vector<1x16x4xbf16>
    %17 = vector.shape_cast %16 : vector<1x16x4xbf16> to vector<16x4xbf16>
    %cst_18 = arith.constant dense<0.000000e+00> : vector<16x16xf32>
    %18 = tpu.matmul %17, %15, %cst_18 {dimension_numbers = #tpu.dot_dimension_numbers<[1], [0], [0], [1], [0, 0, 1, 1], [], []>} : vector<16x4xbf16>, vector<4x16xbf16>, vector<16x16xf32> -> vector<16x16xf32>
    %19 = arith.addf %14, %18 : vector<16x16xf32>
    %c0_19 = arith.constant 0 : index
    %c2 = arith.constant 2 : index
    %20 = vector.load %arg7[%c0_19, %c2] : memref<4x18xbf16, #tpu.memory_space<vmem>>, vector<4x16xbf16>
    %c2_20 = arith.constant 2 : index
    %c0_21 = arith.constant 0 : index
    %c0_22 = arith.constant 0 : index
    %21 = vector.load %arg2[%c2_20, %c0_21, %c0_22] : memref<3x16x4xbf16, #tpu.memory_space<vmem>>, vector<1x16x4xbf16>
    %22 = vector.shape_cast %21 : vector<1x16x4xbf16> to vector<16x4xbf16>
    %cst_23 = arith.constant dense<0.000000e+00> : vector<16x16xf32>
    %23 = tpu.matmul %22, %20, %cst_23 {dimension_numbers = #tpu.dot_dimension_numbers<[1], [0], [0], [1], [0, 0, 1, 1], [], []>} : vector<16x4xbf16>, vector<4x16xbf16>, vector<16x16xf32> -> vector<16x16xf32>
    %24 = arith.addf %19, %23 : vector<16x16xf32>
    %cst_24 = arith.constant dense<0.000000e+00> : vector<16xf32>
    %25 = vector.multi_reduction <add>, %24, %cst_24 [1] : vector<16x16xf32> to vector<16xf32>
    %26 = vector.shape_cast %25 : vector<16xf32> to vector<16x1xf32>
    %cst_25 = arith.constant dense<0.000000e+00> : vector<1xf32>
    %27 = vector.multi_reduction <add>, %26, %cst_25 [0] : vector<16x1xf32> to vector<1xf32>
    %28 = vector.shape_cast %27 : vector<1xf32> to vector<1x1xf32>
    %29 = arith.mulf %24, %24 : vector<16x16xf32>
    %cst_26 = arith.constant dense<0.000000e+00> : vector<16xf32>
    %30 = vector.multi_reduction <add>, %29, %cst_26 [1] : vector<16x16xf32> to vector<16xf32>
    %31 = vector.shape_cast %30 : vector<16xf32> to vector<16x1xf32>
    %cst_27 = arith.constant dense<0.000000e+00> : vector<1xf32>
    %32 = vector.multi_reduction <add>, %31, %cst_27 [0] : vector<16x1xf32> to vector<1xf32>
    %33 = vector.shape_cast %32 : vector<1xf32> to vector<1x1xf32>
    %cst_28 = arith.constant 2.560000e+02 : f32
    %34 = vector.broadcast %cst_28 : f32 to vector<1x1xf32>
    %35 = arith.divf %28, %34 : vector<1x1xf32>
    %36 = arith.mulf %28, %35 : vector<1x1xf32>
    %37 = arith.subf %33, %36 : vector<1x1xf32>
    %cst_29 = arith.constant 2.550000e+02 : f32
    %38 = vector.broadcast %cst_29 : f32 to vector<1x1xf32>
    %39 = arith.divf %37, %38 : vector<1x1xf32>
    %40 = arith.mulf %4, %2 : f32
    %41 = arith.mulf %4, %4 : f32
    %42 = vector.broadcast %41 : f32 to vector<1x1xf32>
    %43 = arith.mulf %42, %39 : vector<1x1xf32>
    %cst_30 = arith.constant 9.99999974E-6 : f32
    %44 = vector.broadcast %cst_30 : f32 to vector<1x1xf32>
    %45 = arith.addf %43, %44 : vector<1x1xf32>
    %46 = math.rsqrt %45 : vector<1x1xf32>
    %47 = vector.broadcast %40 : f32 to vector<1x1xf32>
    %48 = arith.mulf %47, %46 : vector<1x1xf32>
    %49 = vector.broadcast %35 : vector<1x1xf32> to vector<16x16xf32>
    %50 = arith.subf %24, %49 : vector<16x16xf32>
    %51 = vector.broadcast %48 : vector<1x1xf32> to vector<16x16xf32>
    %52 = arith.mulf %50, %51 : vector<16x16xf32>
    %cst_31 = arith.constant 0.000000e+00 : f32
    %53 = vector.broadcast %cst_31 : f32 to vector<16x16xf32>
    %54 = arith.maximumf %52, %53 : vector<16x16xf32>
    %cst_32 = arith.constant 0.000000e+00 : bf16
    %55 = vector.broadcast %cst_32 : bf16 to vector<16x18xbf16>
    %c0_33 = arith.constant 0 : index
    %c0_34 = arith.constant 0 : index
    %56 = vector.load %arg8[%c0_33, %c0_34] : memref<16x18xbf16, #tpu.memory_space<vmem>>, vector<16x18xbf16>
    tpu.vector_store %arg8[%c0_33, %c0_34], %55 {strides = array<i32>} : memref<16x18xbf16, #tpu.memory_space<vmem>>, vector<16x18xbf16>,
    %57 = arith.truncf %54 : vector<16x16xf32> to vector<16x16xbf16>
    %c0_35 = arith.constant 0 : index
    %c1_36 = arith.constant 1 : index
    %58 = vector.load %arg8[%c0_35, %c1_36] : memref<16x18xbf16, #tpu.memory_space<vmem>>, vector<16x16xbf16>
    tpu.vector_store %arg8[%c0_35, %c1_36], %57 {strides = array<i32>} : memref<16x18xbf16, #tpu.memory_space<vmem>>, vector<16x16xbf16>,
    %cst_37 = arith.constant 0.000000e+00 : f32
    %59 = vector.broadcast %cst_37 : f32 to vector<4x16xf32>
    %c0_38 = arith.constant 0 : index
    %c0_39 = arith.constant 0 : index
    %60 = vector.load %arg8[%c0_38, %c0_39] : memref<16x18xbf16, #tpu.memory_space<vmem>>, vector<16x16xbf16>
    %c0_40 = arith.constant 0 : index
    %c0_41 = arith.constant 0 : index
    %c0_42 = arith.constant 0 : index
    %61 = vector.load %arg3[%c0_40, %c0_41, %c0_42] : memref<3x4x16xbf16, #tpu.memory_space<vmem>>, vector<1x4x16xbf16>
    %62 = vector.shape_cast %61 : vector<1x4x16xbf16> to vector<4x16xbf16>
    %cst_43 = arith.constant dense<0.000000e+00> : vector<4x16xf32>
    %63 = tpu.matmul %62, %60, %cst_43 {dimension_numbers = #tpu.dot_dimension_numbers<[1], [0], [0], [1], [0, 0, 1, 1], [], []>} : vector<4x16xbf16>, vector<16x16xbf16>, vector<4x16xf32> -> vector<4x16xf32>
    %64 = arith.addf %59, %63 : vector<4x16xf32>
    %c0_44 = arith.constant 0 : index
    %c1_45 = arith.constant 1 : index
    %65 = vector.load %arg8[%c0_44, %c1_45] : memref<16x18xbf16, #tpu.memory_space<vmem>>, vector<16x16xbf16>
    %c1_46 = arith.constant 1 : index
    %c0_47 = arith.constant 0 : index
    %c0_48 = arith.constant 0 : index
    %66 = vector.load %arg3[%c1_46, %c0_47, %c0_48] : memref<3x4x16xbf16, #tpu.memory_space<vmem>>, vector<1x4x16xbf16>
    %67 = vector.shape_cast %66 : vector<1x4x16xbf16> to vector<4x16xbf16>
    %cst_49 = arith.constant dense<0.000000e+00> : vector<4x16xf32>
    %68 = tpu.matmul %67, %65, %cst_49 {dimension_numbers = #tpu.dot_dimension_numbers<[1], [0], [0], [1], [0, 0, 1, 1], [], []>} : vector<4x16xbf16>, vector<16x16xbf16>, vector<4x16xf32> -> vector<4x16xf32>
    %69 = arith.addf %64, %68 : vector<4x16xf32>
    %c0_50 = arith.constant 0 : index
    %c2_51 = arith.constant 2 : index
    %70 = vector.load %arg8[%c0_50, %c2_51] : memref<16x18xbf16, #tpu.memory_space<vmem>>, vector<16x16xbf16>
    %c2_52 = arith.constant 2 : index
    %c0_53 = arith.constant 0 : index
    %c0_54 = arith.constant 0 : index
    %71 = vector.load %arg3[%c2_52, %c0_53, %c0_54] : memref<3x4x16xbf16, #tpu.memory_space<vmem>>, vector<1x4x16xbf16>
    %72 = vector.shape_cast %71 : vector<1x4x16xbf16> to vector<4x16xbf16>
    %cst_55 = arith.constant dense<0.000000e+00> : vector<4x16xf32>
    %73 = tpu.matmul %72, %70, %cst_55 {dimension_numbers = #tpu.dot_dimension_numbers<[1], [0], [0], [1], [0, 0, 1, 1], [], []>} : vector<4x16xbf16>, vector<16x16xbf16>, vector<4x16xf32> -> vector<4x16xf32>
    %74 = arith.addf %69, %73 : vector<4x16xf32>
    %cst_56 = arith.constant dense<0.000000e+00> : vector<4xf32>
    %75 = vector.multi_reduction <add>, %74, %cst_56 [1] : vector<4x16xf32> to vector<4xf32>
    %76 = vector.shape_cast %75 : vector<4xf32> to vector<4x1xf32>
    %cst_57 = arith.constant dense<0.000000e+00> : vector<1xf32>
    %77 = vector.multi_reduction <add>, %76, %cst_57 [0] : vector<4x1xf32> to vector<1xf32>
    %78 = vector.shape_cast %77 : vector<1xf32> to vector<1x1xf32>
    %79 = arith.mulf %74, %74 : vector<4x16xf32>
    %cst_58 = arith.constant dense<0.000000e+00> : vector<4xf32>
    %80 = vector.multi_reduction <add>, %79, %cst_58 [1] : vector<4x16xf32> to vector<4xf32>
    %81 = vector.shape_cast %80 : vector<4xf32> to vector<4x1xf32>
    %cst_59 = arith.constant dense<0.000000e+00> : vector<1xf32>
    %82 = vector.multi_reduction <add>, %81, %cst_59 [0] : vector<4x1xf32> to vector<1xf32>
    %83 = vector.shape_cast %82 : vector<1xf32> to vector<1x1xf32>
    %cst_60 = arith.constant 6.400000e+01 : f32
    %84 = vector.broadcast %cst_60 : f32 to vector<1x1xf32>
    %85 = arith.divf %78, %84 : vector<1x1xf32>
    %86 = arith.mulf %78, %85 : vector<1x1xf32>
    %87 = arith.subf %83, %86 : vector<1x1xf32>
    %cst_61 = arith.constant 6.300000e+01 : f32
    %88 = vector.broadcast %cst_61 : f32 to vector<1x1xf32>
    %89 = arith.divf %87, %88 : vector<1x1xf32>
    %90 = vector.broadcast %85 : vector<1x1xf32> to vector<4x16xf32>
    %91 = arith.subf %74, %90 : vector<4x16xf32>
    %cst_62 = arith.constant 9.99999974E-6 : f32
    %92 = vector.broadcast %cst_62 : f32 to vector<1x1xf32>
    %93 = arith.addf %89, %92 : vector<1x1xf32>
    %94 = math.rsqrt %93 : vector<1x1xf32>
    %95 = vector.broadcast %2 : f32 to vector<1x1xf32>
    %96 = arith.mulf %95, %94 : vector<1x1xf32>
    %97 = vector.broadcast %96 : vector<1x1xf32> to vector<4x16xf32>
    %98 = arith.mulf %91, %97 : vector<4x16xf32>
    %99 = arith.addf %1, %98 : vector<4x16xf32>
    %c0_63 = arith.constant 0 : index
    %c0_64 = arith.constant 0 : index
    %c0_65 = arith.constant 0 : index
    %100 = vector.load %arg6[%c0_63, %c0_64, %c0_65] : memref<1x4x16xf32, #tpu.memory_space<vmem>>, vector<1x4x16xf32>
    %101 = vector.shape_cast %100 : vector<1x4x16xf32> to vector<4x16xf32>
    %102 = vector.shape_cast %99 : vector<4x16xf32> to vector<1x4x16xf32>
    tpu.vector_store %arg6[%c0_63, %c0_64, %c0_65], %102 {strides = array<i32>} : memref<1x4x16xf32, #tpu.memory_space<vmem>>, vector<1x4x16xf32>,
    return
  }
  func.func @transform_0(%arg0: i32) -> (i32, i32, i32) {
    %c0_i32 = arith.constant 0 : i32
    %c0_i32_0 = arith.constant 0 : i32
    %c0_i32_1 = arith.constant 0 : i32
    return %arg0, %c0_i32, %c0_i32_0 : i32, i32, i32
  }
  func.func @transform_1(%arg0: i32) -> (i32, i32, i32) {
    %c0_i32 = arith.constant 0 : i32
    %c0_i32_0 = arith.constant 0 : i32
    %c0_i32_1 = arith.constant 0 : i32
    %c0_i32_2 = arith.constant 0 : i32
    return %c0_i32, %c0_i32_0, %c0_i32_1 : i32, i32, i32
  }
  func.func @transform_2(%arg0: i32) -> (i32, i32, i32) {
    %c0_i32 = arith.constant 0 : i32
    %c0_i32_0 = arith.constant 0 : i32
    %c0_i32_1 = arith.constant 0 : i32
    %c0_i32_2 = arith.constant 0 : i32
    return %c0_i32, %c0_i32_0, %c0_i32_1 : i32, i32, i32
  }
  func.func @transform_3(%arg0: i32) -> i32 {
    %c0_i32 = arith.constant 0 : i32
    %c0_i32_0 = arith.constant 0 : i32
    return %c0_i32 : i32
  }
  func.func @transform_4(%arg0: i32) -> i32 {
    %c0_i32 = arith.constant 0 : i32
    %c0_i32_0 = arith.constant 0 : i32
    return %c0_i32 : i32
  }
  func.func @transform_5(%arg0: i32) -> (i32, i32, i32) {
    %c0_i32 = arith.constant 0 : i32
    %c0_i32_0 = arith.constant 0 : i32
    %c0_i32_1 = arith.constant 0 : i32
    return %arg0, %c0_i32, %c0_i32_0 : i32, i32, i32
  }
}

</mosaic_0001>

<llo_original>
// kernel: tpu_custom_call.1
$region0: #{tpu_custom_call.1}
  #allocation0 [shape = 'u32[]', space=smem, size = 0x4, offset = 0x4, fixed_abs, tag = 'smem constant byte address 0x4 - core index']
  #allocation1 [shape = 'u32[144,128]{1,0:T(1,128)}', space=vmem, size = 0x12000, scoped, tag = 'internal scratch']
  #allocation2 [shape = 'bf16[4,18]{1,0:T(4,128)(2,1)}', space=vmem, size = 0x400, scoped, tag = 'scratch operand']
  #allocation3 [shape = 'bf16[16,18]{1,0:T(8,128)(2,1)}', space=vmem, size = 0x1000, scoped, tag = 'scratch operand']
  #allocation4 [shape = 'f32[1]{0:T(128)S(6)}', space=smem, size = 0x200, scoped, tag = 'scoped memory for tpu_custom_call.1']
  %s0 = inlined_call_operand.vmem [shape: f32[2,4,16], index: 0, kind: input, shape index: {}]
  %s1 = inlined_call_operand.vmem [shape: bf16[3,16,4], index: 1, kind: input, shape index: {}]
  %s2 = inlined_call_operand.vmem [shape: bf16[3,4,16], index: 2, kind: input, shape index: {}]
  %s3 = inlined_call_operand.vmem [shape: f32[2], index: 3, kind: input, shape index: {}]
  %s4 = inlined_call_operand.<no memory space> [shape: f32[1], index: 4, kind: input, shape index: {}]
  %s5 = inlined_call_operand.hbm [shape: f32[2,4,16], index: 5, kind: output, shape index: {}]
  %s6 = sld [smem:[#allocation0]]
  $region57: #{tpu_custom_call.1} parent=0
    _
  %s8 = ssub.s32 1, %s6
  %s9 = scalar_select 0, %s8, %s6
  %10 = sst [smem:[#allocation4]] %s4
  $region1: #{tpu_custom_call.1} parent=0
    #allocation5 [shape = 'u8[512]{0}', space=smem, size = 0x200, scoped, tag = 'input window, operand 3, single buffered']
    #allocation6 [shape = 's32[2]{0}', space=sflag, size = 0x8, scoped, tag = 'scoped memory for tpu_custom_call.1']
    #allocation7 [shape = 's32[2]{0}', space=sflag, size = 0x8, scoped, tag = 'scoped memory for tpu_custom_call.1']
    #allocation8 [shape = 'u8[4096]{0}', space=vmem, size = 0x1000, scoped, tag = 'output window, operand 0']
    %11 = vsyncpa [#allocation7], 0
    %12 = vsyncpa [#allocation6], 0
    %s13 = scalar_lea.sflag [#allocation6], 1
    %14 = vsyncpa %s13, 0
    loop: start=0, step=1, limit=4
    $region2: #{tpu_custom_call.1} parent=1 // loop_pre_header
      _
    $region3: #{tpu_custom_call.1} parent=1 // loop_header
      %s16 = sphi 0, %s20
      %p17 = scmp.ge.s32.totalorder %s16, 4
      %s26 = sphi 0, %s28
      %s29 = sphi 0, %s26
      %s30 = sphi 0, %s29
      %s46 = sphi 0, %s30
      %s50 = sphi 0, %s50
      %s52 = sphi 0, %s50
      %s53 = sphi 0, %s52
      %s67 = sphi 0, %s53
      %s71 = sphi 0, %s71
      %s73 = sphi 0, %s71
      %s74 = sphi 0, %s73
      %s88 = sphi 0, %s74
      %s92 = sphi 0, %s92
      %s94 = sphi 0, %s92
      %s95 = sphi 0, %s94
      %s109 = sphi 0, %s95
      %s113 = sphi 0, %s113
      %s115 = sphi 0, %s113
      %s116 = sphi 0, %s115
      %s130 = sphi 0, %s116
      %s136 = sphi 0, %s138
      %s139 = sphi 0, %s136
      %s140 = sphi 0, %s139
      %s156 = sphi 0, %s140
    $region4: #{tpu_custom_call.1} parent=1 // loop_header_branch
      %19 = sbr.rel (%p17) target = $region8
    $region5: #{tpu_custom_call.1} parent=1 // loop_body
      %s21 = ssub.s32 %s16, 1
      %s22 = ssub.s32 %s16, 2
      %s23 = sadd.s32 %s16, 1
      %s24 = ssub.s32 %s16, %s23
      %p25 = scmp.eq.s32.totalorder %s24, 0
      %s27 = sadd.s32 %s26, 1
      %s28 = scalar_select %p25, %s26, %s27
      %p31 = pneg %p25
      %p32 = scmp.eq.s32.totalorder %s16, 1
      %p33 = por %p31, %p32
      %p34 = scmp.ne.s32.totalorder %s26, %s29
      %p35 = scmp.eq.s32.totalorder %s16, 0
      %p36 = por %p34, %p35
      %p37 = scmp.ne.s32.totalorder %s26, %s29
      %p38 = scmp.eq.s32.totalorder %s21, 1
      %p39 = por %p37, %p38
      %p40 = scmp.ne.s32.totalorder %s29, %s30
      %p41 = scmp.eq.s32.totalorder %s21, 0
      %p42 = por %p40, %p41
      %p43 = scmp.ne.s32.totalorder %s29, %s30
      %p44 = scmp.eq.s32.totalorder %s22, 1
      %p45 = por %p43, %p44
      %p47 = scmp.ne.s32.totalorder %s30, %s46
      %p48 = scmp.eq.s32.totalorder %s22, 0
      %p49 = por %p47, %p48
      %s51 = sadd.s32 %s50, 1
      %p54 = scmp.eq.s32.totalorder %s16, 1
      %p55 = scmp.ne.s32.totalorder %s50, %s52
      %p56 = scmp.eq.s32.totalorder %s16, 0
      %p57 = por %p55, %p56
      %p58 = scmp.ne.s32.totalorder %s50, %s52
      %p59 = scmp.eq.s32.totalorder %s21, 1
      %p60 = por %p58, %p59
      %p61 = scmp.ne.s32.totalorder %s52, %s53
      %p62 = scmp.eq.s32.totalorder %s21, 0
      %p63 = por %p61, %p62
      %p64 = scmp.ne.s32.totalorder %s52, %s53
      %p65 = scmp.eq.s32.totalorder %s22, 1
      %p66 = por %p64, %p65
      %p68 = scmp.ne.s32.totalorder %s53, %s67
      %p69 = scmp.eq.s32.totalorder %s22, 0
      %p70 = por %p68, %p69
      %s72 = sadd.s32 %s71, 1
      %p75 = scmp.eq.s32.totalorder %s16, 1
      %p76 = scmp.ne.s32.totalorder %s71, %s73
      %p77 = scmp.eq.s32.totalorder %s16, 0
      %p78 = por %p76, %p77
      %p79 = scmp.ne.s32.totalorder %s71, %s73
      %p80 = scmp.eq.s32.totalorder %s21, 1
      %p81 = por %p79, %p80
      %p82 = scmp.ne.s32.totalorder %s73, %s74
      %p83 = scmp.eq.s32.totalorder %s21, 0
      %p84 = por %p82, %p83
      %p85 = scmp.ne.s32.totalorder %s73, %s74
      %p86 = scmp.eq.s32.totalorder %s22, 1
      %p87 = por %p85, %p86
      %p89 = scmp.ne.s32.totalorder %s74, %s88
      %p90 = scmp.eq.s32.totalorder %s22, 0
      %p91 = por %p89, %p90
      %s93 = sadd.s32 %s92, 1
      %p96 = scmp.eq.s32.totalorder %s16, 1
      %p97 = scmp.ne.s32.totalorder %s92, %s94
      %p98 = scmp.eq.s32.totalorder %s16, 0
      %p99 = por %p97, %p98
      %p100 = scmp.ne.s32.totalorder %s92, %s94
      %p101 = scmp.eq.s32.totalorder %s21, 1
      %p102 = por %p100, %p101
      %p103 = scmp.ne.s32.totalorder %s94, %s95
      %p104 = scmp.eq.s32.totalorder %s21, 0
      %p105 = por %p103, %p104
      %p106 = scmp.ne.s32.totalorder %s94, %s95
      %p107 = scmp.eq.s32.totalorder %s22, 1
      %p108 = por %p106, %p107
      %p110 = scmp.ne.s32.totalorder %s95, %s109
      %p111 = scmp.eq.s32.totalorder %s22, 0
      %p112 = por %p110, %p111
      %s114 = sadd.s32 %s113, 1
      %p117 = scmp.eq.s32.totalorder %s16, 1
      %p118 = scmp.ne.s32.totalorder %s113, %s115
      %p119 = scmp.eq.s32.totalorder %s16, 0
      %p120 = por %p118, %p119
      %p121 = scmp.ne.s32.totalorder %s113, %s115
      %p122 = scmp.eq.s32.totalorder %s21, 1
      %p123 = por %p121, %p122
      %p124 = scmp.ne.s32.totalorder %s115, %s116
      %p125 = scmp.eq.s32.totalorder %s21, 0
      %p126 = por %p124, %p125
      %p127 = scmp.ne.s32.totalorder %s115, %s116
      %p128 = scmp.eq.s32.totalorder %s22, 1
      %p129 = por %p127, %p128
      %p131 = scmp.ne.s32.totalorder %s116, %s130
      %p132 = scmp.eq.s32.totalorder %s22, 0
      %p133 = por %p131, %p132
      %s134 = ssub.s32 %s16, %s23
      %p135 = scmp.eq.s32.totalorder %s134, 0
      %s137 = sadd.s32 %s136, 1
      %s138 = scalar_select %p135, %s136, %s137
      %p141 = pneg %p135
      %p142 = scmp.eq.s32.totalorder %s16, 1
      %p143 = por %p141, %p142
      %p144 = scmp.ne.s32.totalorder %s136, %s139
      %p145 = scmp.eq.s32.totalorder %s16, 0
      %p146 = por %p144, %p145
      %p147 = scmp.ne.s32.totalorder %s136, %s139
      %p148 = scmp.eq.s32.totalorder %s21, 1
      %p149 = por %p147, %p148
      %p150 = scmp.ne.s32.totalorder %s139, %s140
      %p151 = scmp.eq.s32.totalorder %s21, 0
      %p152 = por %p150, %p151
      %p153 = scmp.ne.s32.totalorder %s139, %s140
      %p154 = scmp.eq.s32.totalorder %s22, 1
      %p155 = por %p153, %p154
      %p157 = scmp.ne.s32.totalorder %s140, %s156
      %p158 = scmp.eq.s32.totalorder %s22, 0
      %p159 = por %p157, %p158
      %p160 = scmp.le.s32.totalorder 1, %s16
      %p161 = scmp.lt.s32.totalorder %s16, 3
      %p162 = pnand %p160, %p161
      %p163 = pneg %p162
      // Predicated region
      $region9: #{tpu_custom_call.1} parent=5 // pred_check
        _
      $region10: #{tpu_custom_call.1} parent=5 // pred_check_branch
        %165 = sbr.rel (%p162) target = $region12
      $region11: #{tpu_custom_call.1} parent=5 // pred_region
        %s166 = ssub.s32 %s16, 1
        // Predicated region
        $region13: #{tpu_custom_call.1} parent=11 // pred_check
          %p167 = pneg %p63
        $region14: #{tpu_custom_call.1} parent=11 // pred_check_branch
          %169 = sbr.rel (%p167) target = $region16
        $region15: #{tpu_custom_call.1} parent=11 // pred_region
          _
        $region16: #{tpu_custom_call.1} parent=11 // pred_fallthru
          _
        // Predicated region
        $region17: #{tpu_custom_call.1} parent=11 // pred_check
          %p170 = pneg %p84
        $region18: #{tpu_custom_call.1} parent=11 // pred_check_branch
          %172 = sbr.rel (%p170) target = $region20
        $region19: #{tpu_custom_call.1} parent=11 // pred_region
          _
        $region20: #{tpu_custom_call.1} parent=11 // pred_fallthru
          _
        // Predicated region
        $region21: #{tpu_custom_call.1} parent=11 // pred_check
          %p173 = pneg %p105
        $region22: #{tpu_custom_call.1} parent=11 // pred_check_branch
          %175 = sbr.rel (%p173) target = $region24
        $region23: #{tpu_custom_call.1} parent=11 // pred_region
          %s177 = ssub.s32 16, 16
          %178 = vsyncadd [#allocation7], %s177
          %s180 = sshll.u32 %s3, 4
          %s181 = int_to_ptr.vmem [resolvable:$true] %s180
          %183 = dma.vmem_to_smem %s181, 16, [#allocation5], [#allocation7]
        $region24: #{tpu_custom_call.1} parent=11 // pred_fallthru
          _
        // Predicated region
        $region25: #{tpu_custom_call.1} parent=11 // pred_check
          %p184 = pneg %p126
        $region26: #{tpu_custom_call.1} parent=11 // pred_check_branch
          %186 = sbr.rel (%p184) target = $region28
        $region27: #{tpu_custom_call.1} parent=11 // pred_region
          _
        $region28: #{tpu_custom_call.1} parent=11 // pred_fallthru
          _
      $region12: #{tpu_custom_call.1} parent=5 // pred_fallthru
        _
      %p187 = scmp.lt.s32.totalorder %s16, 2
      // Predicated region
      $region29: #{tpu_custom_call.1} parent=5 // pred_check
        %p188 = pneg %p187
      $region30: #{tpu_custom_call.1} parent=5 // pred_check_branch
        %190 = sbr.rel (%p188) target = $region32
      $region31: #{tpu_custom_call.1} parent=5 // pred_region
        // Predicated region
        $region33: #{tpu_custom_call.1} parent=31 // pred_check
          %p191 = pneg %p36
        $region34: #{tpu_custom_call.1} parent=31 // pred_check_branch
          %193 = sbr.rel (%p191) target = $region36
        $region35: #{tpu_custom_call.1} parent=31 // pred_region
          %p194 = scmp.lt.s32.totalorder %s16, 1
          %s195 = scalar_select %p194, %s16, 1
          %s196 = smul.addr %s195, 4
          %s197 = scalar_lea.vmem %s0, %s196
        $region36: #{tpu_custom_call.1} parent=31 // pred_fallthru
          _
      $region32: #{tpu_custom_call.1} parent=5 // pred_fallthru
        _
      %p198 = scmp.le.s32.totalorder 1, %s16
      %p199 = scmp.lt.s32.totalorder %s16, 3
      %p200 = pnand %p198, %p199
      %p201 = pneg %p200
      // Predicated region
      $region37: #{tpu_custom_call.1} parent=5 // pred_check
        _
      $region38: #{tpu_custom_call.1} parent=5 // pred_check_branch
        %203 = sbr.rel (%p200) target = $region40
      $region39: #{tpu_custom_call.1} parent=5 // pred_region
        %s204 = ssub.s32 %s16, 1
        // Predicated region
        $region41: #{tpu_custom_call.1} parent=39 // pred_check
          %p205 = pneg %p105
        $region42: #{tpu_custom_call.1} parent=39 // pred_check_branch
          %207 = sbr.rel (%p205) target = $region44
        $region43: #{tpu_custom_call.1} parent=39 // pred_region
          %208 = dma.done [#allocation7], 16
        $region44: #{tpu_custom_call.1} parent=39 // pred_fallthru
          _
        %209 = sfence
        %p210 = scmp.lt.s32.totalorder %s21, 1
        %s211 = scalar_select %p210, %s21, 1
        %s212 = smul.addr %s211, 4
        %s213 = scalar_lea.vmem %s0, %s212
        %p214 = pneg %p42
        %p215 = pneg %p39
        %p216 = pneg %p63
        %p217 = pneg %p60
        %p218 = pneg %p84
        %p219 = pneg %p81
        %p220 = pneg %p105
        %p221 = pneg %p102
        %p222 = pneg %p126
        %p223 = pneg %p123
        %p224 = pneg %p152
        %p225 = pneg %p149
        %s226 = sand.u32 %s139, 1
        %s227 = scalar_lea.sflag [#allocation6], %s226
        %s228 = sand.u32 %s139, 1
        %s229 = smul.addr %s228, 4
        %s230 = scalar_lea.vmem [#allocation8], %s229
        %p231 = scmp.lt.s32.totalorder %s21, 1
        %s232 = scalar_select %p231, %s21, 1
        %s233 = smul.addr %s232, 4
        %s234 = scalar_lea.vmem %s0, %s233
        %v236 = vld [vmem:[%s234] sm:$0xf]
        %s237 = sld [smem:[#allocation4]]
        %s238 = sld [smem:[#allocation5 + %s21]]
        %vm239 = vcmask 140288
        %240 = vst.msk [vmem:[#allocation2] sm:$0x3] %vm239, 0
        %v241 = vpack.c.bf16 %v236, %v236
        %v244 = vunpack.c.l.s4 1983009808
        %v245 = vunpack.c.0.s8 %v244
        %v246 = vlaneseq
        %v247 = vshrl.u32 %v246, 7
        %v248 = vsub.s32 %v245, %v247
        %v249 = vrot.slane %v241, %v248
        %250 = vrot.lane.b32.xlu0 %v249, 1
        %v251 = vpop.permute.xlu0 %250
        %vm253 = vcmask 132104
        %254 = vst.msk [vmem:[#allocation2] sm:$0x3] %vm253, %v251
        %v255 = vld [vmem:[#allocation2] sm:$0x3]
        %v256 = vld [vmem:[%s1] sm:$0xf]
        %v257 = vld [vmem:[%s1 + $0x4] sm:$0xf]
        %s258 = scalar_lea.vmem %s1, 8
        %v259 = vld [vmem:[%s258] sm:$0xf]
        %v260 = vld [vmem:[%s258 + $0x4] sm:$0xf]
        %v263 = vunpack.c.l.b16 %v259
        %v264 = vunpack.c.l.b16 %v260
        %v265 = vpack.c.b16 %v264, %v263
        %v268 = vunpack.c.l.s4 1983009808
        %v269 = vunpack.c.0.s8 %v268
        %v270 = vlaneseq
        %v271 = vshrl.u32 %v270, 7
        %v272 = vsub.s32 %v269, %v271
        %v273 = vrot.slane %v255, %v272
        %274 = vrot.lane.b32.xlu0 %v273, 127
        %v275 = vpop.permute.xlu0 %274
        %vm276 = vcmask 31744
        %v278 = vsel %vm276, %v265, 0
        %vm280 = vcmask 1041408
        %v282 = vsel %vm280, %v275, 0
        %284 = vmatprep.subr.bf16.mxu0 0
        %285 = vmatpush1.bf16.msra.mxu0 0
        %286 = vmatprep.subr.bf16.mxu0 0
        %287 = vmatpush1.bf16.msra.mxu0 0
        %288 = vmatprep.subr.bf16.mxu0 0
        %289 = vmatpush1.bf16.msra.mxu0 0
        %290 = vmatprep.subr.bf16.mxu0 0
        %291 = vmatpush1.bf16.msra.mxu0 0
        %292 = vmatprep.subr.bf16.mxu0 0
        %293 = vmatpush1.bf16.msra.mxu0 0
        %294 = vmatprep.subr.bf16.mxu0 0
        %295 = vmatpush1.bf16.msra.mxu0 0
        %296 = vmatprep.subr.bf16.mxu0 0
        %297 = vmatpush1.bf16.msra.mxu0 0
        %298 = vmatprep.subr.bf16.mxu0 0
        %299 = vmatpush1.bf16.msra.mxu0 %v282
        %300 = vmatprep.subr.bf16.mxu0 0
        %301 = vmatpush2.bf16.msra.mxu0 0
        %302 = vmatprep.subr.bf16.mxu0 0
        %303 = vmatpush2.bf16.msra.mxu0 0
        %304 = vmatprep.subr.bf16.mxu0 0
        %305 = vmatpush2.bf16.msra.mxu0 0
        %306 = vmatprep.subr.bf16.mxu0 0
        %307 = vmatpush2.bf16.msra.mxu0 0
        %308 = vmatprep.subr.bf16.mxu0 0
        %309 = vmatpush2.bf16.msra.mxu0 0
        %310 = vmatprep.subr.bf16.mxu0 0
        %311 = vmatpush2.bf16.msra.mxu0 0
        %312 = vmatprep.subr.bf16.mxu0 0
        %313 = vmatpush2.bf16.msra.mxu0 0
        %314 = vmatprep.subr.bf16.mxu0 0
        %315 = vmatpush2.bf16.msra.mxu0 0
        %316 = vmatprep.mubr.bf16.mxu0 0
        %317 = vmatmul.mubr.bf16.gmra.mxu0 %v278
        %v318 = vpop.f32.mrf.mxu0
        %v319 = vadd.f32 0.0, %v318
        %v320 = vpop.f32.mrf.mxu0
        %v321 = vpop.f32.mrf.mxu0
        %v322 = vadd.f32 0.0, %v321
        %v323 = vpop.f32.mrf.mxu0
        %324 = vdwg.mxu0
        %v327 = vunpack.c.l.b16 %v256
        %v328 = vunpack.c.l.b16 %v257
        %v329 = vpack.c.b16 %v328, %v327
        %v331 = vsel %vm276, %v329, 0
        %v334 = vsel %vm280, %v255, 0
        %336 = vmatprep.subr.bf16.mxu0 0
        %337 = vmatpush1.bf16.msra.mxu0 0
        %338 = vmatprep.subr.bf16.mxu0 0
        %339 = vmatpush1.bf16.msra.mxu0 0
        %340 = vmatprep.subr.bf16.mxu0 0
        %341 = vmatpush1.bf16.msra.mxu0 0
        %342 = vmatprep.subr.bf16.mxu0 0
        %343 = vmatpush1.bf16.msra.mxu0 0
        %344 = vmatprep.subr.bf16.mxu0 0
        %345 = vmatpush1.bf16.msra.mxu0 0
        %346 = vmatprep.subr.bf16.mxu0 0
        %347 = vmatpush1.bf16.msra.mxu0 0
        %348 = vmatprep.subr.bf16.mxu0 0
        %349 = vmatpush1.bf16.msra.mxu0 0
        %350 = vmatprep.subr.bf16.mxu0 0
        %351 = vmatpush1.bf16.msra.mxu0 %v334
        %352 = vmatprep.subr.bf16.mxu0 0
        %353 = vmatpush2.bf16.msra.mxu0 0
        %354 = vmatprep.subr.bf16.mxu0 0
        %355 = vmatpush2.bf16.msra.mxu0 0
        %356 = vmatprep.subr.bf16.mxu0 0
        %357 = vmatpush2.bf16.msra.mxu0 0
        %358 = vmatprep.subr.bf16.mxu0 0
        %359 = vmatpush2.bf16.msra.mxu0 0
        %360 = vmatprep.subr.bf16.mxu0 0
        %361 = vmatpush2.bf16.msra.mxu0 0
        %362 = vmatprep.subr.bf16.mxu0 0
        %363 = vmatpush2.bf16.msra.mxu0 0
        %364 = vmatprep.subr.bf16.mxu0 0
        %365 = vmatpush2.bf16.msra.mxu0 0
        %366 = vmatprep.subr.bf16.mxu0 0
        %367 = vmatpush2.bf16.msra.mxu0 0
        %368 = vmatprep.mubr.bf16.mxu0 0
        %369 = vmatmul.mubr.bf16.gmra.mxu0 %v331
        %v370 = vpop.f32.mrf.mxu0
        %v371 = vadd.f32 %v319, %v370
        %v372 = vpop.f32.mrf.mxu0
        %v373 = vpop.f32.mrf.mxu0
        %v374 = vadd.f32 %v322, %v373
        %v375 = vpop.f32.mrf.mxu0
        %376 = vdwg.mxu0
        %v377 = vld [vmem:[#allocation2] sm:$0x3]
        %s378 = scalar_lea.vmem %s1, 16
        %v379 = vld [vmem:[%s378] sm:$0xf]
        %v380 = vld [vmem:[%s378 + $0x4] sm:$0xf]
        %v383 = vunpack.c.l.b16 %v379
        %v384 = vunpack.c.l.b16 %v380
        %v385 = vpack.c.b16 %v384, %v383
        %v388 = vunpack.c.l.s4 1983009808
        %v389 = vunpack.c.0.s8 %v388
        %v390 = vlaneseq
        %v391 = vshrl.u32 %v390, 7
        %v392 = vsub.s32 %v389, %v391
        %v393 = vrot.slane %v377, %v392
        %394 = vrot.lane.b32.xlu0 %v393, 126
        %v395 = vpop.permute.xlu0 %394
        %v397 = vsel %vm276, %v385, 0
        %v400 = vsel %vm280, %v395, 0
        %402 = vmatprep.subr.bf16.mxu0 0
        %403 = vmatpush1.bf16.msra.mxu0 0
        %404 = vmatprep.subr.bf16.mxu0 0
        %405 = vmatpush1.bf16.msra.mxu0 0
        %406 = vmatprep.subr.bf16.mxu0 0
        %407 = vmatpush1.bf16.msra.mxu0 0
        %408 = vmatprep.subr.bf16.mxu0 0
        %409 = vmatpush1.bf16.msra.mxu0 0
        %410 = vmatprep.subr.bf16.mxu0 0
        %411 = vmatpush1.bf16.msra.mxu0 0
        %412 = vmatprep.subr.bf16.mxu0 0
        %413 = vmatpush1.bf16.msra.mxu0 0
        %414 = vmatprep.subr.bf16.mxu0 0
        %415 = vmatpush1.bf16.msra.mxu0 0
        %416 = vmatprep.subr.bf16.mxu0 0
        %417 = vmatpush1.bf16.msra.mxu0 %v400
        %418 = vmatprep.subr.bf16.mxu0 0
        %419 = vmatpush2.bf16.msra.mxu0 0
        %420 = vmatprep.subr.bf16.mxu0 0
        %421 = vmatpush2.bf16.msra.mxu0 0
        %422 = vmatprep.subr.bf16.mxu0 0
        %423 = vmatpush2.bf16.msra.mxu0 0
        %424 = vmatprep.subr.bf16.mxu0 0
        %425 = vmatpush2.bf16.msra.mxu0 0
        %426 = vmatprep.subr.bf16.mxu0 0
        %427 = vmatpush2.bf16.msra.mxu0 0
        %428 = vmatprep.subr.bf16.mxu0 0
        %429 = vmatpush2.bf16.msra.mxu0 0
        %430 = vmatprep.subr.bf16.mxu0 0
        %431 = vmatpush2.bf16.msra.mxu0 0
        %432 = vmatprep.subr.bf16.mxu0 0
        %433 = vmatpush2.bf16.msra.mxu0 0
        %434 = vmatprep.mubr.bf16.mxu0 0
        %435 = vmatmul.mubr.bf16.gmra.mxu0 %v397
        %v436 = vpop.f32.mrf.mxu0
        %v437 = vadd.f32 0.0, %v436
        %v438 = vpop.f32.mrf.mxu0
        %v439 = vpop.f32.mrf.mxu0
        %v440 = vadd.f32 0.0, %v439
        %v441 = vpop.f32.mrf.mxu0
        %442 = vdwg.mxu0
        %v443 = vadd.f32 %v371, %v437
        %v444 = vadd.f32 %v374, %v440
        %vm445 = vcmask 130048
        %v446 = vsel %vm445, %v443, 0.0
        %447 = vadd.xlane.f32.xlu0 %v446
        %v448 = vpop.xlane.xlu0 %447
        %v449 = vsel %vm445, %v444, 0.0
        %450 = vadd.xlane.f32.xlu0 %v449
        %v451 = vpop.xlane.xlu0 %450
        %v452 = vadd.f32 %v448, %v451
        %v453 = vrot.slane %v452, 4
        %v454 = vadd.f32 %v452, %v453
        %v455 = vrot.slane %v454, 2
        %v456 = vadd.f32 %v454, %v455
        %v457 = vrot.slane %v456, 1
        %v458 = vadd.f32 %v456, %v457
        %v459 = vmul.f32 %v443, %v443
        %v460 = vmul.f32 %v444, %v444
        %v461 = vsel %vm445, %v459, 0.0
        %462 = vadd.xlane.f32.xlu0 %v461
        %v463 = vpop.xlane.xlu0 %462
        %v464 = vsel %vm445, %v460, 0.0
        %465 = vadd.xlane.f32.xlu0 %v464
        %v466 = vpop.xlane.xlu0 %465
        %v467 = vadd.f32 %v463, %v466
        %v468 = vrot.slane %v467, 4
        %v469 = vadd.f32 %v467, %v468
        %v470 = vrot.slane %v469, 2
        %v471 = vadd.f32 %v469, %v470
        %v472 = vrot.slane %v471, 1
        %v473 = vadd.f32 %v471, %v472
        %v474 = vrcp.pop 256.0
        %v475 = vmul.f32 %v458, %v474
        %v476 = vmul.f32 %v458, %v475
        %v477 = vsub.f32 %v473, %v476
        %v478 = vrcp.pop 255.0
        %v479 = vmul.f32 %v477, %v478
        %s480 = smul.f32 %s238, %s237
        %s481 = smul.f32 %s238, %s238
        %v482 = vstv %s481
        %v483 = vmul.f32 %v482, %v479
        %v484 = vadd.f32 %v483, 1e-05
        %v485 = vrsqrt.pop %v484
        %v486 = vstv %s480
        %v487 = vmul.f32 %v486, %v485
        %v488 = vsub.f32 %v443, %v475
        %v489 = vsub.f32 %v444, %v475
        %v490 = vmul.f32 %v488, %v487
        %v491 = vmul.f32 %v489, %v487
        %v492 = vmax.f32 %v490, 0.0
        %v493 = vmax.f32 %v491, 0.0
        %vm494 = vcmask 142336
        %495 = vst.msk [vmem:[#allocation3] sm:$0xf] %vm494, 0
        %496 = vst.msk [vmem:[#allocation3 + $0x4] sm:$0xf] %vm494, 0
        %v497 = vpack.c.bf16 %v493, %v492
        %v499 = vunpack.c.l.b16 %v497
        %v500 = vunpack.c.h.b16 %v497
        %v501 = vpack.c.b16 %v499, %v499
        %v502 = vpack.c.b16 %v500, %v500
        %503 = vrot.lane.b32.xlu0 %v501, 1
        %v504 = vpop.permute.xlu0 %503
        %505 = vrot.lane.b32.xlu0 %v502, 1
        %v506 = vpop.permute.xlu0 %505
        %vm509 = vcmask 134152
        %510 = vst.msk [vmem:[#allocation3] sm:$0xf] %vm509, %v504
        %511 = vst.msk [vmem:[#allocation3 + $0x4] sm:$0xf] %vm509, %v506
        %v512 = vld [vmem:[#allocation3] sm:$0xf]
        %v513 = vld [vmem:[#allocation3 + $0x4] sm:$0xf]
        %v514 = vld [vmem:[%s2] sm:$0x3]
        %s515 = scalar_lea.vmem %s2, 2
        %v516 = vld [vmem:[%s515] sm:$0x3]
        %v519 = vunpack.c.l.b16 %v512
        %v520 = vunpack.c.l.b16 %v513
        %v521 = vpack.c.b16 %v520, %v519
        %522 = vrot.lane.b32.xlu0 %v521, 127
        %v523 = vpop.permute.xlu0 %522
        %v526 = vsel %vm445, %v516, 0
        %528 = vmatprep.subr.bf16.mxu0 0
        %529 = vmatpush1.bf16.msra.mxu0 0
        %530 = vmatprep.subr.bf16.mxu0 0
        %531 = vmatpush1.bf16.msra.mxu0 0
        %532 = vmatprep.subr.bf16.mxu0 0
        %533 = vmatpush1.bf16.msra.mxu0 0
        %534 = vmatprep.subr.bf16.mxu0 0
        %535 = vmatpush1.bf16.msra.mxu0 0
        %536 = vmatprep.subr.bf16.mxu0 0
        %537 = vmatpush1.bf16.msra.mxu0 0
        %538 = vmatprep.subr.bf16.mxu0 0
        %539 = vmatpush1.bf16.msra.mxu0 0
        %540 = vmatprep.subr.bf16.mxu0 0
        %541 = vmatpush1.bf16.msra.mxu0 0
        %542 = vmatprep.subr.bf16.mxu0 0
        %543 = vmatpush1.bf16.msra.mxu0 %v523
        %544 = vmatprep.subr.bf16.mxu0 0
        %545 = vmatpush2.bf16.msra.mxu0 0
        %546 = vmatprep.subr.bf16.mxu0 0
        %547 = vmatpush2.bf16.msra.mxu0 0
        %548 = vmatprep.subr.bf16.mxu0 0
        %549 = vmatpush2.bf16.msra.mxu0 0
        %550 = vmatprep.subr.bf16.mxu0 0
        %551 = vmatpush2.bf16.msra.mxu0 0
        %552 = vmatprep.subr.bf16.mxu0 0
        %553 = vmatpush2.bf16.msra.mxu0 0
        %554 = vmatprep.subr.bf16.mxu0 0
        %555 = vmatpush2.bf16.msra.mxu0 0
        %556 = vmatprep.subr.bf16.mxu0 0
        %557 = vmatpush2.bf16.msra.mxu0 0
        %558 = vmatprep.subr.bf16.mxu0 0
        %559 = vmatpush2.bf16.msra.mxu0 0
        %560 = vmatprep.mubr.bf16.mxu0 0
        %561 = vmatmul.mubr.bf16.gmra.mxu0 %v526
        %v562 = vpop.f32.mrf.mxu0
        %v563 = vadd.f32 0.0, %v562
        %v564 = vpop.f32.mrf.mxu0
        %v565 = vpop.f32.mrf.mxu0
        %v566 = vpop.f32.mrf.mxu0
        %567 = vdwg.mxu0
        %v570 = vsel %vm445, %v514, 0
        %572 = vmatprep.subr.bf16.mxu0 0
        %573 = vmatpush1.bf16.msra.mxu0 0
        %574 = vmatprep.subr.bf16.mxu0 0
        %575 = vmatpush1.bf16.msra.mxu0 0
        %576 = vmatprep.subr.bf16.mxu0 0
        %577 = vmatpush1.bf16.msra.mxu0 0
        %578 = vmatprep.subr.bf16.mxu0 0
        %579 = vmatpush1.bf16.msra.mxu0 0
        %580 = vmatprep.subr.bf16.mxu0 0
        %581 = vmatpush1.bf16.msra.mxu0 0
        %582 = vmatprep.subr.bf16.mxu0 0
        %583 = vmatpush1.bf16.msra.mxu0 0
        %584 = vmatprep.subr.bf16.mxu0 0
        %585 = vmatpush1.bf16.msra.mxu0 0
        %586 = vmatprep.subr.bf16.mxu0 0
        %587 = vmatpush1.bf16.msra.mxu0 %v521
        %588 = vmatprep.subr.bf16.mxu0 0
        %589 = vmatpush2.bf16.msra.mxu0 0
        %590 = vmatprep.subr.bf16.mxu0 0
        %591 = vmatpush2.bf16.msra.mxu0 0
        %592 = vmatprep.subr.bf16.mxu0 0
        %593 = vmatpush2.bf16.msra.mxu0 0
        %594 = vmatprep.subr.bf16.mxu0 0
        %595 = vmatpush2.bf16.msra.mxu0 0
        %596 = vmatprep.subr.bf16.mxu0 0
        %597 = vmatpush2.bf16.msra.mxu0 0
        %598 = vmatprep.subr.bf16.mxu0 0
        %599 = vmatpush2.bf16.msra.mxu0 0
        %600 = vmatprep.subr.bf16.mxu0 0
        %601 = vmatpush2.bf16.msra.mxu0 0
        %602 = vmatprep.subr.bf16.mxu0 0
        %603 = vmatpush2.bf16.msra.mxu0 0
        %604 = vmatprep.mubr.bf16.mxu0 0
        %605 = vmatmul.mubr.bf16.gmra.mxu0 %v570
        %v606 = vpop.f32.mrf.mxu0
        %v607 = vadd.f32 %v563, %v606
        %v608 = vpop.f32.mrf.mxu0
        %v609 = vpop.f32.mrf.mxu0
        %v610 = vpop.f32.mrf.mxu0
        %611 = vdwg.mxu0
        %s612 = scalar_lea.vmem %s2, 4
        %v613 = vld [vmem:[%s612] sm:$0x3]
        %614 = vrot.lane.b32.xlu0 %v521, 126
        %v615 = vpop.permute.xlu0 %614
        %v618 = vsel %vm445, %v613, 0
        %620 = vmatprep.subr.bf16.mxu0 0
        %621 = vmatpush1.bf16.msra.mxu0 0
        %622 = vmatprep.subr.bf16.mxu0 0
        %623 = vmatpush1.bf16.msra.mxu0 0
        %624 = vmatprep.subr.bf16.mxu0 0
        %625 = vmatpush1.bf16.msra.mxu0 0
        %626 = vmatprep.subr.bf16.mxu0 0
        %627 = vmatpush1.bf16.msra.mxu0 0
        %628 = vmatprep.subr.bf16.mxu0 0
        %629 = vmatpush1.bf16.msra.mxu0 0
        %630 = vmatprep.subr.bf16.mxu0 0
        %631 = vmatpush1.bf16.msra.mxu0 0
        %632 = vmatprep.subr.bf16.mxu0 0
        %633 = vmatpush1.bf16.msra.mxu0 0
        %634 = vmatprep.subr.bf16.mxu0 0
        %635 = vmatpush1.bf16.msra.mxu0 %v615
        %636 = vmatprep.subr.bf16.mxu0 0
        %637 = vmatpush2.bf16.msra.mxu0 0
        %638 = vmatprep.subr.bf16.mxu0 0
        %639 = vmatpush2.bf16.msra.mxu0 0
        %640 = vmatprep.subr.bf16.mxu0 0
        %641 = vmatpush2.bf16.msra.mxu0 0
        %642 = vmatprep.subr.bf16.mxu0 0
        %643 = vmatpush2.bf16.msra.mxu0 0
        %644 = vmatprep.subr.bf16.mxu0 0
        %645 = vmatpush2.bf16.msra.mxu0 0
        %646 = vmatprep.subr.bf16.mxu0 0
        %647 = vmatpush2.bf16.msra.mxu0 0
        %648 = vmatprep.subr.bf16.mxu0 0
        %649 = vmatpush2.bf16.msra.mxu0 0
        %650 = vmatprep.subr.bf16.mxu0 0
        %651 = vmatpush2.bf16.msra.mxu0 0
        %652 = vmatprep.mubr.bf16.mxu0 0
        %653 = vmatmul.mubr.bf16.gmra.mxu0 %v618
        %v654 = vpop.f32.mrf.mxu0
        %v655 = vadd.f32 0.0, %v654
        %v656 = vpop.f32.mrf.mxu0
        %v657 = vpop.f32.mrf.mxu0
        %v658 = vpop.f32.mrf.mxu0
        %659 = vdwg.mxu0
        %v660 = vadd.f32 %v607, %v655
        %vm661 = vcmask 125952
        %v662 = vsel %vm661, %v660, 0.0
        %663 = vadd.xlane.f32.xlu0 %v662
        %v664 = vpop.xlane.xlu0 %663
        %vm665 = vcmask 1043456
        %v666 = vsel %vm665, %v664, 0.0
        %v667 = vrot.slane %v666, 4
        %v668 = vadd.f32 %v666, %v667
        %v669 = vrot.slane %v668, 2
        %v670 = vadd.f32 %v668, %v669
        %v671 = vrot.slane %v670, 1
        %v672 = vadd.f32 %v670, %v671
        %v673 = vmul.f32 %v660, %v660
        %v674 = vsel %vm661, %v673, 0.0
        %675 = vadd.xlane.f32.xlu0 %v674
        %v676 = vpop.xlane.xlu0 %675
        %v677 = vsel %vm665, %v676, 0.0
        %v678 = vrot.slane %v677, 4
        %v679 = vadd.f32 %v677, %v678
        %v680 = vrot.slane %v679, 2
        %v681 = vadd.f32 %v679, %v680
        %v682 = vrot.slane %v681, 1
        %v683 = vadd.f32 %v681, %v682
        %v684 = vrcp.pop 64.0
        %v685 = vmul.f32 %v672, %v684
        %v686 = vmul.f32 %v672, %v685
        %v687 = vsub.f32 %v683, %v686
        %v688 = vrcp.pop 63.0
        %v689 = vmul.f32 %v687, %v688
        %v690 = vsub.f32 %v660, %v685
        %v691 = vadd.f32 %v689, 1e-05
        %v692 = vrsqrt.pop %v691
        %v693 = vstv %s237
        %v694 = vmul.f32 %v693, %v692
        %v695 = vmul.f32 %v690, %v694
        %v696 = vadd.f32 %v236, %v695
        %697 = vst.msk [vmem:[%s230] sm:$0xf] %vm661, %v696
        %s698 = sand.u32 %s139, 1
        %s699 = scalar_lea.sflag [#allocation6], %s698
        %s700 = sand.u32 %s139, 1
        %s701 = smul.addr %s700, 4
        %s702 = scalar_lea.vmem [#allocation8], %s701
        // Predicated region
        $region45: #{tpu_custom_call.1} parent=39 // pred_check
          %p703 = pneg %p149
        $region46: #{tpu_custom_call.1} parent=39 // pred_check_branch
          %705 = sbr.rel (%p703) target = $region48
        $region47: #{tpu_custom_call.1} parent=39 // pred_region
          %s707 = ssub.s32 64, 64
          %708 = vsyncadd %s699, %s707
          %s709 = smul.addr %s21, 64
          %s710 = scalar_lea.hbm %s5, %s709
          %s712 = sshll.u32 %s702, 4
          %s713 = int_to_ptr.vmem [resolvable:$true] %s712
          %715 = dma.vmem_to_hbm [thread:$0]  %s713, 64, %s710, %s699
        $region48: #{tpu_custom_call.1} parent=39 // pred_fallthru
          _
      $region40: #{tpu_custom_call.1} parent=5 // pred_fallthru
        _
      %p716 = scmp.le.s32.totalorder 2, %s16
      // Predicated region
      $region49: #{tpu_custom_call.1} parent=5 // pred_check
        %p717 = pneg %p716
      $region50: #{tpu_custom_call.1} parent=5 // pred_check_branch
        %719 = sbr.rel (%p717) target = $region52
      $region51: #{tpu_custom_call.1} parent=5 // pred_region
        %s720 = ssub.s32 %s16, 2
        // Predicated region
        $region53: #{tpu_custom_call.1} parent=51 // pred_check
          %p721 = pneg %p155
        $region54: #{tpu_custom_call.1} parent=51 // pred_check_branch
          %723 = sbr.rel (%p721) target = $region56
        $region55: #{tpu_custom_call.1} parent=51 // pred_region
          %s724 = sand.u32 %s140, 1
          %s725 = scalar_lea.sflag [#allocation6], %s724
          %s726 = sand.u32 %s140, 1
          %s727 = smul.addr %s726, 4
          %s728 = scalar_lea.vmem [#allocation8], %s727
          %729 = dma.done %s725, 64
        $region56: #{tpu_custom_call.1} parent=51 // pred_fallthru
          _
      $region52: #{tpu_custom_call.1} parent=5 // pred_fallthru
        _
    $region6: #{tpu_custom_call.1} parent=1 // loop_footer
      %s20 = sadd.s32 1, %s16
    $region7: #{tpu_custom_call.1} parent=1 // loop_footer_branch
      %15 = sbr.rel target = $region3
    $region8: #{tpu_custom_call.1} parent=1 // loop_exit
      _
    %730 = vsyncpa [#allocation6], 1
    %s731 = scalar_lea.sflag [#allocation6], 1
    %732 = vsyncpa %s731, 1
    %733 = vsyncpa [#allocation7], 1
    %s734 = scalar_lea.sflag [#allocation7], 1
    %735 = vsyncpa %s734, 1

</llo_original>
